<compile_context>
chip_gen: v7x
topology: tpu7x:2x2x1
jax: 0.10.0
libtpu: 0.0.40
codegen_flags: <defaults>
</compile_context>

<pallas_src>
import jax
import jax.numpy as jnp
from jax.experimental import pallas as pl
from jax.experimental.pallas import tpu as pltpu


def _round_up(x: int, m: int) -> int:
    return ((x + m - 1) // m) * m


def _vmem_capacity_bytes() -> int:
    try:
        return int(pltpu.get_tpu_info().vmem_capacity_bytes)
    except Exception:
        return 64 * 1024 * 1024   # conservative default (v7x per-TC VMEM)


# --------------------------------------------------------------------------- #
# Kernels
# --------------------------------------------------------------------------- #
def _mlp_kernel_acc(x_ref, w1_ref, b1_ref, w2_ref, b2_ref, o_ref, acc_ref):
    """Accumulate layer-2 over hidden tiles in an f32 scratch (narrow out dtype)."""
    k = pl.program_id(2)

    @pl.when(k == 0)
    def _():
        acc_ref[...] = jnp.zeros_like(acc_ref)

    # Layer 1 chunk on the MXU: (TB, Nin_p) @ (Nin_p, TK) -> f32 (TB, TK).
    h = jnp.dot(x_ref[...], w1_ref[...], preferred_element_type=jnp.float32)
    # Bias + ReLU in f32 on the VPU.
    h = jnp.maximum(h + b1_ref[...], 0.0)
    # Layer 2 chunk, accumulated over hidden tiles into the resident scratch.
    acc_ref[...] += jnp.dot(h.astype(w2_ref.dtype), w2_ref[...],
                            preferred_element_type=jnp.float32)

    @pl.when(k == pl.num_programs(2) - 1)
    def _():
        o_ref[...] = (acc_ref[...] + b2_ref[...]).astype(o_ref.dtype)


def _mlp_kernel_f32_out(x_ref, w1_ref, b1_ref, w2_ref, b2_ref, o_ref):
    """float32 output: accumulate directly into o_ref (no scratch needed)."""
    k = pl.program_id(2)

    h = jnp.dot(x_ref[...], w1_ref[...], preferred_element_type=jnp.float32)
    h = jnp.maximum(h + b1_ref[...], 0.0)
    y = jnp.dot(h.astype(w2_ref.dtype), w2_ref[...],
                preferred_element_type=jnp.float32)

    @pl.when(k == 0)
    def _():
        o_ref[...] = y

    @pl.when(k > 0)
    def _():
        o_ref[...] += y

    @pl.when(k == pl.num_programs(2) - 1)
    def _():
        o_ref[...] += b2_ref[...]


# --------------------------------------------------------------------------- #
# One-time parameter preparation (hoisted out of the per-call path)
# --------------------------------------------------------------------------- #
def prepare_mlp_params(w1, b1, w2, b2, *, compute_dtype=jnp.bfloat16,
                       block_b=None, block_n=None, block_k=None):
    """Pad + cast weights once and pick per-generation tile sizes.

    w1: (Nin, Nhid); b1: (Nhid,); w2: (Nhid, Nout); b2: (Nout,)  — weights are
    the transposes of the torch.nn.Linear weights (use zeros for use_bias=False).
    Returns a plan dict consumed by `two_layer_mlp_prepared`.
    """
    Nin, Nhid = w1.shape
    Nhid_w, Nout = w2.shape
    assert Nhid_w == Nhid and b1.shape == (Nhid,) and b2.shape == (Nout,)

    vmem = _vmem_capacity_bytes()
    vmem_limit = min(int(vmem * 0.75), 100 * 1024 * 1024)
    budget = int(vmem_limit * 0.85)            # headroom for compiler scratch
    big_chip = vmem >= (96 << 20)              # v5e/v6e: 128 MiB; v7x: 64 MiB

    cd = compute_dtype
    cd_bytes = jnp.dtype(cd).itemsize
    out_bytes = 4                              # budget for f32 out / accumulator

    # Lane-dense Nin (full MXU K for layer 1). Zero padding is exact.
    nin_p = _round_up(Nin, 128)

    # Nout tiling: keeps W2 / out / acc VMEM flat when Nout is large.
    nout_min = _round_up(Nout, 128)
    if block_n is not None:
        tn = min(_round_up(block_n, 128), nout_min)
    else:
        tn_cap = 2048 if big_chip else 1024
        tn = nout_min if nout_min <= tn_cap else tn_cap
    nout_p = _round_up(nout_min, tn)

    # 256-wide hidden chunks match the v6e/v7x 2x256x256 MXU.
    nhid_min = _round_up(Nhid, 256)

    # Choose (tb, tk) against the VMEM budget. tb is the arithmetic-intensity
    # knob; tk grows until the weights are fully resident (single k step).
    tb_pref = 1024 if big_chip else 512
    tb = tk = None
    for cand in (tb_pref, 512, 256, 128, 64, 32, 16):
        if cand > tb_pref:
            continue
        fixed = (2 * cand * nin_p * cd_bytes       # x  (double-buffered)
                 + 2 * cand * tn * out_bytes       # out
                 + cand * tn * 4                   # f32 accumulator (worst case)
                 + 4 * tn * 4)                     # biases (approx)
        rem = budget - fixed
        if rem <= 0:
            continue
        per_k = 2 * (nin_p + tn) * cd_bytes + 2 * 4   # W1 col + W2 row + b1 per tk
        tk_cand = min(nhid_min, (rem // per_k) // 256 * 256)
        if tk_cand >= 256:
            tb, tk = int(cand), int(tk_cand)
            break
    if tb is None:                                  # degenerate fallback
        tb, tk = 16, 256

    if block_b is not None:
        tb = max(16, _round_up(block_b, 16))
    if block_k is not None:
        tk = min(_round_up(block_k, 128), _round_up(Nhid, 128))

    nhid_p = _round_up(Nhid, tk)

    # Padded + cast weights (built ONCE; kernel never re-pads them per call).
    w1_p = jnp.pad(w1.astype(cd), ((0, nin_p - Nin), (0, nhid_p - Nhid)))
    b1_p = jnp.pad(b1.astype(jnp.float32), (0, nhid_p - Nhid))[None, :]
    w2_p = jnp.pad(w2.astype(cd), ((0, nhid_p - Nhid), (0, nout_p - Nout)))
    b2_p = jnp.pad(b2.astype(jnp.float32), (0, nout_p - Nout))[None, :]

    return dict(w1=w1_p, b1=b1_p, w2=w2_p, b2=b2_p,
                Nin=Nin, Nhid=Nhid, Nout=Nout,
                nin_p=nin_p, nhid_p=nhid_p, nout_p=nout_p,
                tb=tb, tn=tn, tk=tk,
                compute_dtype=cd, vmem_limit=int(vmem_limit),
                small_vmem=not big_chip)


# --------------------------------------------------------------------------- #
# Forward pass
# --------------------------------------------------------------------------- #
def two_layer_mlp_prepared(x, plan):
    """TwoLayerMlp forward using pre-padded params. x: (B, Nin) -> (B, Nout)."""
    B, Nin = x.shape
    assert Nin == plan["Nin"]
    out_dtype = x.dtype
    nin_p, nhid_p, nout_p = plan["nin_p"], plan["nhid_p"], plan["nout_p"]
    tn, tk = plan["tn"], plan["tk"]

    tb = min(plan["tb"], _round_up(B, 16))
    b_p = _round_up(B, tb)

    # v7x has 2 TensorCores: make sure the parallel axes have >= 2 tiles when
    # the batch is big enough to split.
    if plan["small_vmem"] and (b_p // tb) * (nout_p // tn) < 2 and tb >= 32:
        tb = _round_up(tb // 2, 16)
        b_p = _round_up(B, tb)

    x_p = jnp.pad(x.astype(plan["compute_dtype"]),
                  ((0, b_p - B), (0, nin_p - Nin)))

    grid = (b_p // tb, nout_p // tn, nhid_p // tk)

    in_specs = [
        pl.BlockSpec((tb, nin_p), lambda i, j, k: (i, 0)),    # x : batch-tiled
        pl.BlockSpec((nin_p, tk), lambda i, j, k: (0, k)),    # W1: hidden-tiled
        pl.BlockSpec((1, tk),     lambda i, j, k: (0, k)),    # b1: hidden-tiled
        pl.BlockSpec((tk, tn),    lambda i, j, k: (k, j)),    # W2: hidden x nout
        pl.BlockSpec((1, tn),     lambda i, j, k: (0, j)),    # b2: nout-tiled
    ]
    out_specs = pl.BlockSpec((tb, tn), lambda i, j, k: (i, j))

    if out_dtype == jnp.float32:
        kernel = _mlp_kernel_f32_out
        scratch = []
    else:
        kernel = _mlp_kernel_acc
        scratch = [pltpu.VMEM((tb, tn), jnp.float32)]

    out = pl.pallas_call(
        kernel,
        out_shape=jax.ShapeDtypeStruct((b_p, nout_p), out_dtype),
        grid=grid,
        in_specs=in_specs,
        out_specs=out_specs,
        scratch_shapes=scratch,
        compiler_params=pltpu.CompilerParams(
            dimension_semantics=("parallel", "parallel", "arbitrary"),
            vmem_limit_bytes=plan["vmem_limit"],
        ),
    )(x_p, plan["w1"], plan["b1"], plan["w2"], plan["b2"])

    return out[:B, :plan["Nout"]]


def two_layer_mlp(x, w1, b1, w2, b2, *, compute_dtype=jnp.bfloat16,
                  block_b=None, block_n=None, block_k=None):
    """Convenience one-shot path (re-prepares weights every call; prefer
    prepare_mlp_params + two_layer_mlp_prepared for repeated forwards)."""
    plan = prepare_mlp_params(w1, b1, w2, b2, compute_dtype=compute_dtype,
                              block_b=block_b, block_n=block_n, block_k=block_k)
    return two_layer_mlp_prepared(x, plan)


def init_params(key, Nin, Nhid, Nout, dtype=jnp.float32):
    """Deterministic init mimicking torch.nn.Linear's U(-1/sqrt(fan_in), ...)."""
    k1, k2, k3, k4 = jax.random.split(key, 4)
    bound1 = 1.0 / (Nin ** 0.5)
    bound2 = 1.0 / (Nhid ** 0.5)
    # Stored transposed relative to torch ((out, in) -> (in, out)).
    w1 = jax.random.uniform(k1, (Nin, Nhid), dtype, -bound1, bound1)
    b1 = jax.random.uniform(k2, (Nhid,), dtype, -bound1, bound1)
    w2 = jax.random.uniform(k3, (Nhid, Nout), dtype, -bound2, bound2)
    b2 = jax.random.uniform(k4, (Nout,), dtype, -bound2, bound2)
    return w1, b1, w2, b2


if __name__ == "__main__":
    # Module default: Nhid = Nin.
    B, Nin, Nout = 8, 32, 16
    Nhid = Nin
    key = jax.random.PRNGKey(0)
    kx, kp = jax.random.split(key)
    x = jax.random.normal(kx, (B, Nin), jnp.float32)
    w1, b1, w2, b2 = init_params(kp, Nin, Nhid, Nout)

    ref = jnp.maximum(x @ w1 + b1, 0.0) @ w2 + b2

    # Prepared (hoisted) path with default bf16 MXU operands, f32 accumulation.
    plan = prepare_mlp_params(w1, b1, w2, b2)
    out = jax.block_until_ready(two_layer_mlp_prepared(x, plan))
    assert out.shape == (B, Nout)
    assert jnp.allclose(out, ref, atol=5e-2, rtol=5e-2), (
        float(jnp.max(jnp.abs(out - ref))))

    # f32 compute path: tight check of padding/tiling/accumulator logic.
    out32 = jax.block_until_ready(
        two_layer_mlp(x, w1, b1, w2, b2, compute_dtype=jnp.float32))
    assert jnp.allclose(out32, ref, atol=1e-5, rtol=1e-5), (
        float(jnp.max(jnp.abs(out32 - ref))))

    # Multi-tile smoke test: several batch tiles x hidden tiles, ragged Nout.
    B2, Nin2, Nhid2, Nout2 = 40, 64, 320, 10
    kx2, kp2 = jax.random.split(jax.random.PRNGKey(1))
    x2 = jax.random.normal(kx2, (B2, Nin2), jnp.float32)
    w1b, b1b, w2b, b2b = init_params(kp2, Nin2, Nhid2, Nout2)
    ref2 = jnp.maximum(x2 @ w1b + b1b, 0.0) @ w2b + b2b

    out2 = jax.block_until_ready(
        two_layer_mlp(x2, w1b, b1b, w2b, b2b, compute_dtype=jnp.float32,
                      block_b=16, block_k=128))
    assert out2.shape == (B2, Nout2)
    assert jnp.allclose(out2, ref2, atol=1e-4, rtol=1e-4), (
        float(jnp.max(jnp.abs(out2 - ref2))))

    # bf16 output path: exercises the scratch-accumulator kernel.
    out2b = jax.block_until_ready(
        two_layer_mlp(x2.astype(jnp.bfloat16), w1b, b1b, w2b, b2b,
                      block_b=16, block_k=128))
    assert out2b.shape == (B2, Nout2) and out2b.dtype == jnp.bfloat16
    assert jnp.allclose(out2b.astype(jnp.float32), ref2, atol=1e-1, rtol=1e-1), (
        float(jnp.max(jnp.abs(out2b.astype(jnp.float32) - ref2))))

    print("KERNEL_OK")
</pallas_src>

<mosaic_0001>
module attributes {stable_mosaic.version = 11 : i64} {
  func.func @_mlp_kernel_f32_out(%arg0: i32, %arg1: i32, %arg2: i32, %arg3: memref<16x128xbf16, #tpu.memory_space<vmem>>, %arg4: memref<128x256xbf16, #tpu.memory_space<vmem>>, %arg5: memref<1x256xf32, #tpu.memory_space<vmem>>, %arg6: memref<256x128xbf16, #tpu.memory_space<vmem>>, %arg7: memref<1x128xf32, #tpu.memory_space<vmem>>, %arg8: memref<16x128xf32, #tpu.memory_space<vmem>>) attributes {dimension_semantics = [#tpu.dimension_semantics<parallel>, #tpu.dimension_semantics<parallel>, #tpu.dimension_semantics<arbitrary>], iteration_bounds = array<i64: 1, 1, 1>, scalar_prefetch = 0 : i64, scratch_operands = 0 : i64, tpu.core_type = #tpu.core_type<tc>, window_params = [{transform_indices = @transform_0, window_bounds = array<i64: 16, 128>}, {transform_indices = @transform_1, window_bounds = array<i64: 128, 256>}, {transform_indices = @transform_2, window_bounds = array<i64: 1, 256>}, {transform_indices = @transform_3, window_bounds = array<i64: 256, 128>}, {transform_indices = @transform_4, window_bounds = array<i64: 1, 128>}, {transform_indices = @transform_5, window_bounds = array<i64: 16, 128>}]} {
    %c0 = arith.constant 0 : index
    %c0_0 = arith.constant 0 : index
    %0 = vector.load %arg3[%c0, %c0_0] : memref<16x128xbf16, #tpu.memory_space<vmem>>, vector<16x128xbf16>
    %c0_1 = arith.constant 0 : index
    %c0_2 = arith.constant 0 : index
    %1 = vector.load %arg4[%c0_1, %c0_2] : memref<128x256xbf16, #tpu.memory_space<vmem>>, vector<128x256xbf16>
    %cst = arith.constant dense<0.000000e+00> : vector<16x256xf32>
    %2 = tpu.matmul %0, %1, %cst {dimension_numbers = #tpu.dot_dimension_numbers<[1], [0], [0], [1], [0, 0, 1, 1], [], []>} : vector<16x128xbf16>, vector<128x256xbf16>, vector<16x256xf32> -> vector<16x256xf32>
    %c0_3 = arith.constant 0 : index
    %c0_4 = arith.constant 0 : index
    %3 = vector.load %arg5[%c0_3, %c0_4] : memref<1x256xf32, #tpu.memory_space<vmem>>, vector<1x256xf32>
    %4 = vector.broadcast %3 : vector<1x256xf32> to vector<16x256xf32>
    %5 = arith.addf %2, %4 : vector<16x256xf32>
    %cst_5 = arith.constant 0.000000e+00 : f32
    %6 = vector.broadcast %cst_5 : f32 to vector<16x256xf32>
    %7 = arith.maximumf %5, %6 : vector<16x256xf32>
    %8 = arith.truncf %7 : vector<16x256xf32> to vector<16x256xbf16>
    %c0_6 = arith.constant 0 : index
    %c0_7 = arith.constant 0 : index
    %9 = vector.load %arg6[%c0_6, %c0_7] : memref<256x128xbf16, #tpu.memory_space<vmem>>, vector<256x128xbf16>
    %cst_8 = arith.constant dense<0.000000e+00> : vector<16x128xf32>
    %10 = tpu.matmul %8, %9, %cst_8 {dimension_numbers = #tpu.dot_dimension_numbers<[1], [0], [0], [1], [0, 0, 1, 1], [], []>} : vector<16x256xbf16>, vector<256x128xbf16>, vector<16x128xf32> -> vector<16x128xf32>
    %c0_i32 = arith.constant 0 : i32
    %11 = arith.cmpi eq, %arg2, %c0_i32 : i32
    %12 = arith.extui %11 : i1 to i32
    %c0_i32_9 = arith.constant 0 : i32
    %13 = arith.cmpi ne, %12, %c0_i32_9 : i32
    scf.if %13 {
      %c0_14 = arith.constant 0 : index
      %c0_15 = arith.constant 0 : index
      %20 = vector.load %arg8[%c0_14, %c0_15] : memref<16x128xf32, #tpu.memory_space<vmem>>, vector<16x128xf32>
      tpu.vector_store %arg8[%c0_14, %c0_15], %10 {strides = array<i32>} : memref<16x128xf32, #tpu.memory_space<vmem>>, vector<16x128xf32>,
    } else {
    }
    %c0_i32_10 = arith.constant 0 : i32
    %14 = arith.cmpi sgt, %arg2, %c0_i32_10 : i32
    %15 = arith.extui %14 : i1 to i32
    %c0_i32_11 = arith.constant 0 : i32
    %16 = arith.cmpi ne, %15, %c0_i32_11 : i32
    scf.if %16 {
      %c0_14 = arith.constant 0 : index
      %c0_15 = arith.constant 0 : index
      %20 = vector.load %arg8[%c0_14, %c0_15] : memref<16x128xf32, #tpu.memory_space<vmem>>, vector<16x128xf32>
      %21 = arith.addf %20, %10 : vector<16x128xf32>
      %c0_16 = arith.constant 0 : index
      %c0_17 = arith.constant 0 : index
      %22 = vector.load %arg8[%c0_16, %c0_17] : memref<16x128xf32, #tpu.memory_space<vmem>>, vector<16x128xf32>
      tpu.vector_store %arg8[%c0_16, %c0_17], %21 {strides = array<i32>} : memref<16x128xf32, #tpu.memory_space<vmem>>, vector<16x128xf32>,
    } else {
    }
    %c0_i32_12 = arith.constant 0 : i32
    %17 = arith.cmpi eq, %arg2, %c0_i32_12 : i32
    %18 = arith.extui %17 : i1 to i32
    %c0_i32_13 = arith.constant 0 : i32
    %19 = arith.cmpi ne, %18, %c0_i32_13 : i32
    scf.if %19 {
      %c0_14 = arith.constant 0 : index
      %c0_15 = arith.constant 0 : index
      %20 = vector.load %arg8[%c0_14, %c0_15] : memref<16x128xf32, #tpu.memory_space<vmem>>, vector<16x128xf32>
      %c0_16 = arith.constant 0 : index
      %c0_17 = arith.constant 0 : index
      %21 = vector.load %arg7[%c0_16, %c0_17] : memref<1x128xf32, #tpu.memory_space<vmem>>, vector<1x128xf32>
      %22 = vector.broadcast %21 : vector<1x128xf32> to vector<16x128xf32>
      %23 = arith.addf %20, %22 : vector<16x128xf32>
      %c0_18 = arith.constant 0 : index
      %c0_19 = arith.constant 0 : index
      %24 = vector.load %arg8[%c0_18, %c0_19] : memref<16x128xf32, #tpu.memory_space<vmem>>, vector<16x128xf32>
      tpu.vector_store %arg8[%c0_18, %c0_19], %23 {strides = array<i32>} : memref<16x128xf32, #tpu.memory_space<vmem>>, vector<16x128xf32>,
    } else {
    }
    return
  }
  func.func @transform_0(%arg0: i32, %arg1: i32, %arg2: i32) -> (i32, i32) {
    %c0_i32 = arith.constant 0 : i32
    %c0_i32_0 = arith.constant 0 : i32
    return %arg0, %c0_i32 : i32, i32
  }
  func.func @transform_1(%arg0: i32, %arg1: i32, %arg2: i32) -> (i32, i32) {
    %c0_i32 = arith.constant 0 : i32
    %c0_i32_0 = arith.constant 0 : i32
    return %c0_i32, %arg2 : i32, i32
  }
  func.func @transform_2(%arg0: i32, %arg1: i32, %arg2: i32) -> (i32, i32) {
    %c0_i32 = arith.constant 0 : i32
    %c0_i32_0 = arith.constant 0 : i32
    return %c0_i32, %arg2 : i32, i32
  }
  func.func @transform_3(%arg0: i32, %arg1: i32, %arg2: i32) -> (i32, i32) {
    %c0_i32 = arith.constant 0 : i32
    return %arg2, %arg1 : i32, i32
  }
  func.func @transform_4(%arg0: i32, %arg1: i32, %arg2: i32) -> (i32, i32) {
    %c0_i32 = arith.constant 0 : i32
    %c0_i32_0 = arith.constant 0 : i32
    return %c0_i32, %arg1 : i32, i32
  }
  func.func @transform_5(%arg0: i32, %arg1: i32, %arg2: i32) -> (i32, i32) {
    %c0_i32 = arith.constant 0 : i32
    return %arg0, %arg1 : i32, i32
  }
}

</mosaic_0001>

<llo_original>
// kernel: tpu_custom_call.1
$region0: #{tpu_custom_call.1}
  #allocation0 [shape = 'u32[]', space=smem, size = 0x4, offset = 0x4, fixed_abs, tag = 'smem constant byte address 0x4 - core index']
  #allocation1 [shape = 'u32[144,128]{1,0:T(1,128)}', space=vmem, size = 0x12000, scoped, tag = 'internal scratch']
  %s0 = inlined_call_operand.hbm [shape: bf16[16,128], index: 0, kind: input, shape index: {}]
  %s1 = inlined_call_operand.hbm [shape: bf16[128,256], index: 1, kind: input, shape index: {}]
  %s2 = inlined_call_operand.vmem [shape: f32[1,256], index: 2, kind: input, shape index: {}]
  %s3 = inlined_call_operand.hbm [shape: bf16[256,128], index: 3, kind: input, shape index: {}]
  %s4 = inlined_call_operand.vmem [shape: f32[1,128], index: 4, kind: input, shape index: {}]
  %s5 = inlined_call_operand.hbm [shape: f32[16,128], index: 5, kind: output, shape index: {}]
  %s6 = sld [smem:[#allocation0]]
  $region54: #{tpu_custom_call.1} parent=0
    _
  %s8 = ssub.s32 1, %s6
  %s9 = scalar_select 0, %s8, %s6
  $region1: #{tpu_custom_call.1} parent=0
    #allocation2 [shape = 'u8[4096]{0}', space=vmem, size = 0x1000, scoped, tag = 'input window, operand 0, single buffered']
    #allocation3 [shape = 's32[1]{0}', space=sflag, size = 0x4, scoped, tag = 'scoped memory for tpu_custom_call.1']
    #allocation4 [shape = 's32[1]{0}', space=sflag, size = 0x4, scoped, tag = 'scoped memory for tpu_custom_call.1']
    #allocation5 [shape = 'u8[65536]{0}', space=vmem, size = 0x10000, scoped, tag = 'input window, operand 1, single buffered']
    #allocation6 [shape = 's32[1]{0}', space=sflag, size = 0x4, scoped, tag = 'scoped memory for tpu_custom_call.1']
    #allocation7 [shape = 'u8[65536]{0}', space=vmem, size = 0x10000, scoped, tag = 'input window, operand 3, single buffered']
    #allocation8 [shape = 'u8[8192]{0}', space=vmem, size = 0x2000, scoped, tag = 'output window, operand 0, single buffered']
    %10 = vsyncpa [#allocation3], 0
    %11 = vsyncpa [#allocation6], 0
    %12 = vsyncpa [#allocation4], 0
    // Predicated region
    $region2: #{tpu_custom_call.1} parent=1 // pred_check
      _
    $region3: #{tpu_custom_call.1} parent=1 // pred_check_branch
      %14 = sbr.rel (0) target = $region5
    $region4: #{tpu_custom_call.1} parent=1 // pred_region
      %s16 = ssub.s32 128, 128
      %17 = vsyncadd [#allocation3], %s16
      %s18 = sshll.u32 [#allocation2], 4
      %s19 = int_to_ptr.vmem [resolvable:$true] %s18
      %24 = dma.hbm_to_vmem [thread:$0]  %s0, 128, %s19, [#allocation3], 64, 64, 4
    $region5: #{tpu_custom_call.1} parent=1 // pred_fallthru
      _
    // Predicated region
    $region6: #{tpu_custom_call.1} parent=1 // pred_check
      _
    $region7: #{tpu_custom_call.1} parent=1 // pred_check_branch
      %26 = sbr.rel (0) target = $region9
    $region8: #{tpu_custom_call.1} parent=1 // pred_region
      %s28 = ssub.s32 2048, 2048
      %29 = vsyncadd [#allocation6], %s28
      %s30 = sshll.u32 [#allocation5], 4
      %s31 = int_to_ptr.vmem [resolvable:$true] %s30
      %36 = dma.hbm_to_vmem [thread:$0]  %s1, 2048, %s31, [#allocation6], 128, 128, 8
    $region9: #{tpu_custom_call.1} parent=1 // pred_fallthru
      _
    // Predicated region
    $region10: #{tpu_custom_call.1} parent=1 // pred_check
      _
    $region11: #{tpu_custom_call.1} parent=1 // pred_check_branch
      %38 = sbr.rel (0) target = $region13
    $region12: #{tpu_custom_call.1} parent=1 // pred_region
      _
    $region13: #{tpu_custom_call.1} parent=1 // pred_fallthru
      _
    // Predicated region
    $region14: #{tpu_custom_call.1} parent=1 // pred_check
      _
    $region15: #{tpu_custom_call.1} parent=1 // pred_check_branch
      %40 = sbr.rel (0) target = $region17
    $region16: #{tpu_custom_call.1} parent=1 // pred_region
      %s42 = ssub.s32 2048, 2048
      %43 = vsyncadd [#allocation6], %s42
      %s44 = sshll.u32 [#allocation7], 4
      %s45 = int_to_ptr.vmem [resolvable:$true] %s44
      %50 = dma.hbm_to_vmem [thread:$0]  %s3, 2048, %s45, [#allocation6], 64, 64, 4
    $region17: #{tpu_custom_call.1} parent=1 // pred_fallthru
      _
    // Predicated region
    $region18: #{tpu_custom_call.1} parent=1 // pred_check
      _
    $region19: #{tpu_custom_call.1} parent=1 // pred_check_branch
      %52 = sbr.rel (0) target = $region21
    $region20: #{tpu_custom_call.1} parent=1 // pred_region
      _
    $region21: #{tpu_custom_call.1} parent=1 // pred_fallthru
      _
    // Predicated region
    $region22: #{tpu_custom_call.1} parent=1 // pred_check
      _
    $region23: #{tpu_custom_call.1} parent=1 // pred_check_branch
      %54 = sbr.rel (0) target = $region25
    $region24: #{tpu_custom_call.1} parent=1 // pred_region
      %55 = dma.done [#allocation3], 128
    $region25: #{tpu_custom_call.1} parent=1 // pred_fallthru
      _
    // Predicated region
    $region26: #{tpu_custom_call.1} parent=1 // pred_check
      _
    $region27: #{tpu_custom_call.1} parent=1 // pred_check_branch
      %57 = sbr.rel (0) target = $region29
    $region28: #{tpu_custom_call.1} parent=1 // pred_region
      %58 = dma.done [#allocation6], 2048
    $region29: #{tpu_custom_call.1} parent=1 // pred_fallthru
      _
    // Predicated region
    $region30: #{tpu_custom_call.1} parent=1 // pred_check
      _
    $region31: #{tpu_custom_call.1} parent=1 // pred_check_branch
      %60 = sbr.rel (0) target = $region33
    $region32: #{tpu_custom_call.1} parent=1 // pred_region
      %61 = dma.done [#allocation6], 2048
    $region33: #{tpu_custom_call.1} parent=1 // pred_fallthru
      _
    %v63 = vld [vmem:[#allocation2] sm:$0xf]
    %v64 = vld [vmem:[#allocation2 + $0x4] sm:$0xf]
    %v65 = vld [vmem:[#allocation5] sm:$0xff]
    %v66 = vld [vmem:[#allocation5 + $0x8] sm:$0xff]
    %v67 = vld [vmem:[#allocation5 + $0x10] sm:$0xff]
    %v68 = vld [vmem:[#allocation5 + $0x18] sm:$0xff]
    %v69 = vld [vmem:[#allocation5 + $0x20] sm:$0xff]
    %v70 = vld [vmem:[#allocation5 + $0x28] sm:$0xff]
    %v71 = vld [vmem:[#allocation5 + $0x30] sm:$0xff]
    %v72 = vld [vmem:[#allocation5 + $0x38] sm:$0xff]
    %v73 = vld [vmem:[#allocation5 + $0x40] sm:$0xff]
    %v74 = vld [vmem:[#allocation5 + $0x48] sm:$0xff]
    %v75 = vld [vmem:[#allocation5 + $0x50] sm:$0xff]
    %v76 = vld [vmem:[#allocation5 + $0x58] sm:$0xff]
    %v77 = vld [vmem:[#allocation5 + $0x60] sm:$0xff]
    %v78 = vld [vmem:[#allocation5 + $0x68] sm:$0xff]
    %v79 = vld [vmem:[#allocation5 + $0x70] sm:$0xff]
    %v80 = vld [vmem:[#allocation5 + $0x78] sm:$0xff]
    %v81 = vld [vmem:[%s2] sm:$0x3]
    %v83 = vlaneseq
    %v84 = vshrl.u32 %v83, 7
    %v85 = vsub.s32 0, %v84
    %v86 = vrot.slane %v81, %v85
    %v87 = vlaneseq
    %v88 = vshrl.u32 %v87, 7
    %v89 = vsub.s32 1, %v88
    %v90 = vrot.slane %v81, %v89
    %v95 = vunpack.c.l.b16 %v63
    %v96 = vunpack.c.l.b16 %v64
    %v97 = vpack.c.b16 %v96, %v95
    %v115 = vunpack.c.l.b16 %v65
    %v116 = vunpack.c.h.b16 %v65
    %v117 = vunpack.c.l.b16 %v66
    %v118 = vunpack.c.h.b16 %v66
    %v119 = vunpack.c.l.b16 %v67
    %v120 = vunpack.c.h.b16 %v67
    %v121 = vunpack.c.l.b16 %v68
    %v122 = vunpack.c.h.b16 %v68
    %v123 = vunpack.c.l.b16 %v69
    %v124 = vunpack.c.h.b16 %v69
    %v125 = vunpack.c.l.b16 %v70
    %v126 = vunpack.c.h.b16 %v70
    %v127 = vunpack.c.l.b16 %v71
    %v128 = vunpack.c.h.b16 %v71
    %v129 = vunpack.c.l.b16 %v72
    %v130 = vunpack.c.h.b16 %v72
    %v131 = vunpack.c.l.b16 %v73
    %v132 = vunpack.c.h.b16 %v73
    %v133 = vunpack.c.l.b16 %v74
    %v134 = vunpack.c.h.b16 %v74
    %v135 = vunpack.c.l.b16 %v75
    %v136 = vunpack.c.h.b16 %v75
    %v137 = vunpack.c.l.b16 %v76
    %v138 = vunpack.c.h.b16 %v76
    %v139 = vunpack.c.l.b16 %v77
    %v140 = vunpack.c.h.b16 %v77
    %v141 = vunpack.c.l.b16 %v78
    %v142 = vunpack.c.h.b16 %v78
    %v143 = vunpack.c.l.b16 %v79
    %v144 = vunpack.c.h.b16 %v79
    %v145 = vunpack.c.l.b16 %v80
    %v146 = vunpack.c.h.b16 %v80
    %v147 = vpack.c.b16 %v117, %v115
    %v148 = vpack.c.b16 %v118, %v116
    %v149 = vpack.c.b16 %v121, %v119
    %v150 = vpack.c.b16 %v122, %v120
    %v151 = vpack.c.b16 %v125, %v123
    %v152 = vpack.c.b16 %v126, %v124
    %v153 = vpack.c.b16 %v129, %v127
    %v154 = vpack.c.b16 %v130, %v128
    %v155 = vpack.c.b16 %v133, %v131
    %v156 = vpack.c.b16 %v134, %v132
    %v157 = vpack.c.b16 %v137, %v135
    %v158 = vpack.c.b16 %v138, %v136
    %v159 = vpack.c.b16 %v141, %v139
    %v160 = vpack.c.b16 %v142, %v140
    %v161 = vpack.c.b16 %v145, %v143
    %v162 = vpack.c.b16 %v146, %v144
    %179 = vmatprep.subr.bf16.mxu0 %v148
    %180 = vmatpush1.bf16.msra.mxu0 %v147
    %181 = vmatprep.subr.bf16.mxu0 %v150
    %182 = vmatpush1.bf16.msra.mxu0 %v149
    %183 = vmatprep.subr.bf16.mxu0 %v152
    %184 = vmatpush1.bf16.msra.mxu0 %v151
    %185 = vmatprep.subr.bf16.mxu0 %v154
    %186 = vmatpush1.bf16.msra.mxu0 %v153
    %187 = vmatprep.subr.bf16.mxu0 %v156
    %188 = vmatpush1.bf16.msra.mxu0 %v155
    %189 = vmatprep.subr.bf16.mxu0 %v158
    %190 = vmatpush1.bf16.msra.mxu0 %v157
    %191 = vmatprep.subr.bf16.mxu0 %v160
    %192 = vmatpush1.bf16.msra.mxu0 %v159
    %193 = vmatprep.subr.bf16.mxu0 %v162
    %194 = vmatpush1.bf16.msra.mxu0 %v161
    %195 = vmatprep.subr.bf16.mxu0 0
    %196 = vmatpush1.bf16.msra.mxu0 0
    %197 = vmatprep.subr.bf16.mxu0 0
    %198 = vmatpush1.bf16.msra.mxu0 0
    %199 = vmatprep.subr.bf16.mxu0 0
    %200 = vmatpush1.bf16.msra.mxu0 0
    %201 = vmatprep.subr.bf16.mxu0 0
    %202 = vmatpush1.bf16.msra.mxu0 0
    %203 = vmatprep.subr.bf16.mxu0 0
    %204 = vmatpush1.bf16.msra.mxu0 0
    %205 = vmatprep.subr.bf16.mxu0 0
    %206 = vmatpush1.bf16.msra.mxu0 0
    %207 = vmatprep.subr.bf16.mxu0 0
    %208 = vmatpush1.bf16.msra.mxu0 0
    %209 = vmatprep.subr.bf16.mxu0 0
    %210 = vmatpush1.bf16.msra.mxu0 0
    %211 = vmatprep.mubr.bf16.mxu0 0
    %212 = vmatmul.mubr.bf16.gmra.mrb[0].mxu0 %v97
    %v213 = vpop.f32.mrb[0].mxu0
    %v214 = vadd.f32 %v86, %v213
    %v215 = vpop.f32.mrb[0].mxu0
    %v216 = vadd.f32 %v90, %v215
    %v217 = vpop.f32.mrb[0].mxu0
    %v218 = vadd.f32 %v86, %v217
    %v219 = vpop.f32.mrb[0].mxu0
    %v220 = vadd.f32 %v90, %v219
    %221 = vdwg.mxu0
    %v222 = vmax.f32 %v214, 0.0
    %v223 = vmax.f32 %v216, 0.0
    %v224 = vmax.f32 %v218, 0.0
    %v225 = vmax.f32 %v220, 0.0
    %v226 = vpack.c.bf16 %v224, %v222
    %v227 = vpack.c.bf16 %v225, %v223
    %v228 = vld [vmem:[#allocation7] sm:$0xf]
    %v229 = vld [vmem:[#allocation7 + $0x4] sm:$0xf]
    %v230 = vld [vmem:[#allocation7 + $0x8] sm:$0xf]
    %v231 = vld [vmem:[#allocation7 + $0xc] sm:$0xf]
    %v232 = vld [vmem:[#allocation7 + $0x10] sm:$0xf]
    %v233 = vld [vmem:[#allocation7 + $0x14] sm:$0xf]
    %v234 = vld [vmem:[#allocation7 + $0x18] sm:$0xf]
    %v235 = vld [vmem:[#allocation7 + $0x1c] sm:$0xf]
    %v236 = vld [vmem:[#allocation7 + $0x20] sm:$0xf]
    %v237 = vld [vmem:[#allocation7 + $0x24] sm:$0xf]
    %v238 = vld [vmem:[#allocation7 + $0x28] sm:$0xf]
    %v239 = vld [vmem:[#allocation7 + $0x2c] sm:$0xf]
    %v240 = vld [vmem:[#allocation7 + $0x30] sm:$0xf]
    %v241 = vld [vmem:[#allocation7 + $0x34] sm:$0xf]
    %v242 = vld [vmem:[#allocation7 + $0x38] sm:$0xf]
    %v243 = vld [vmem:[#allocation7 + $0x3c] sm:$0xf]
    %v244 = vld [vmem:[#allocation7 + $0x40] sm:$0xf]
    %v245 = vld [vmem:[#allocation7 + $0x44] sm:$0xf]
    %v246 = vld [vmem:[#allocation7 + $0x48] sm:$0xf]
    %v247 = vld [vmem:[#allocation7 + $0x4c] sm:$0xf]
    %v248 = vld [vmem:[#allocation7 + $0x50] sm:$0xf]
    %v249 = vld [vmem:[#allocation7 + $0x54] sm:$0xf]
    %v250 = vld [vmem:[#allocation7 + $0x58] sm:$0xf]
    %v251 = vld [vmem:[#allocation7 + $0x5c] sm:$0xf]
    %v252 = vld [vmem:[#allocation7 + $0x60] sm:$0xf]
    %v253 = vld [vmem:[#allocation7 + $0x64] sm:$0xf]
    %v254 = vld [vmem:[#allocation7 + $0x68] sm:$0xf]
    %v255 = vld [vmem:[#allocation7 + $0x6c] sm:$0xf]
    %v256 = vld [vmem:[#allocation7 + $0x70] sm:$0xf]
    %v257 = vld [vmem:[#allocation7 + $0x74] sm:$0xf]
    %v258 = vld [vmem:[#allocation7 + $0x78] sm:$0xf]
    %v259 = vld [vmem:[#allocation7 + $0x7c] sm:$0xf]
    %v292 = vunpack.c.l.b16 %v228
    %v293 = vunpack.c.l.b16 %v229
    %v294 = vunpack.c.l.b16 %v230
    %v295 = vunpack.c.l.b16 %v231
    %v296 = vunpack.c.l.b16 %v232
    %v297 = vunpack.c.l.b16 %v233
    %v298 = vunpack.c.l.b16 %v234
    %v299 = vunpack.c.l.b16 %v235
    %v300 = vunpack.c.l.b16 %v236
    %v301 = vunpack.c.l.b16 %v237
    %v302 = vunpack.c.l.b16 %v238
    %v303 = vunpack.c.l.b16 %v239
    %v304 = vunpack.c.l.b16 %v240
    %v305 = vunpack.c.l.b16 %v241
    %v306 = vunpack.c.l.b16 %v242
    %v307 = vunpack.c.l.b16 %v243
    %v308 = vunpack.c.l.b16 %v244
    %v309 = vunpack.c.l.b16 %v245
    %v310 = vunpack.c.l.b16 %v246
    %v311 = vunpack.c.l.b16 %v247
    %v312 = vunpack.c.l.b16 %v248
    %v313 = vunpack.c.l.b16 %v249
    %v314 = vunpack.c.l.b16 %v250
    %v315 = vunpack.c.l.b16 %v251
    %v316 = vunpack.c.l.b16 %v252
    %v317 = vunpack.c.l.b16 %v253
    %v318 = vunpack.c.l.b16 %v254
    %v319 = vunpack.c.l.b16 %v255
    %v320 = vunpack.c.l.b16 %v256
    %v321 = vunpack.c.l.b16 %v257
    %v322 = vunpack.c.l.b16 %v258
    %v323 = vunpack.c.l.b16 %v259
    %v324 = vpack.c.b16 %v293, %v292
    %v325 = vpack.c.b16 %v295, %v294
    %v326 = vpack.c.b16 %v297, %v296
    %v327 = vpack.c.b16 %v299, %v298
    %v328 = vpack.c.b16 %v301, %v300
    %v329 = vpack.c.b16 %v303, %v302
    %v330 = vpack.c.b16 %v305, %v304
    %v331 = vpack.c.b16 %v307, %v306
    %v332 = vpack.c.b16 %v309, %v308
    %v333 = vpack.c.b16 %v311, %v310
    %v334 = vpack.c.b16 %v313, %v312
    %v335 = vpack.c.b16 %v315, %v314
    %v336 = vpack.c.b16 %v317, %v316
    %v337 = vpack.c.b16 %v319, %v318
    %v338 = vpack.c.b16 %v321, %v320
    %v339 = vpack.c.b16 %v323, %v322
    %356 = vmatprep.subr.bf16.mxu0 0
    %357 = vmatpush1.bf16.msra.mxu0 %v324
    %358 = vmatprep.subr.bf16.mxu0 0
    %359 = vmatpush1.bf16.msra.mxu0 %v325
    %360 = vmatprep.subr.bf16.mxu0 0
    %361 = vmatpush1.bf16.msra.mxu0 %v326
    %362 = vmatprep.subr.bf16.mxu0 0
    %363 = vmatpush1.bf16.msra.mxu0 %v327
    %364 = vmatprep.subr.bf16.mxu0 0
    %365 = vmatpush1.bf16.msra.mxu0 %v328
    %366 = vmatprep.subr.bf16.mxu0 0
    %367 = vmatpush1.bf16.msra.mxu0 %v329
    %368 = vmatprep.subr.bf16.mxu0 0
    %369 = vmatpush1.bf16.msra.mxu0 %v330
    %370 = vmatprep.subr.bf16.mxu0 0
    %371 = vmatpush1.bf16.msra.mxu0 %v331
    %372 = vmatprep.subr.bf16.mxu0 0
    %373 = vmatpush1.bf16.msra.mxu0 %v332
    %374 = vmatprep.subr.bf16.mxu0 0
    %375 = vmatpush1.bf16.msra.mxu0 %v333
    %376 = vmatprep.subr.bf16.mxu0 0
    %377 = vmatpush1.bf16.msra.mxu0 %v334
    %378 = vmatprep.subr.bf16.mxu0 0
    %379 = vmatpush1.bf16.msra.mxu0 %v335
    %380 = vmatprep.subr.bf16.mxu0 0
    %381 = vmatpush1.bf16.msra.mxu0 %v336
    %382 = vmatprep.subr.bf16.mxu0 0
    %383 = vmatpush1.bf16.msra.mxu0 %v337
    %384 = vmatprep.subr.bf16.mxu0 0
    %385 = vmatpush1.bf16.msra.mxu0 %v338
    %386 = vmatprep.subr.bf16.mxu0 0
    %387 = vmatpush1.bf16.msra.mxu0 %v339
    %388 = vmatprep.mubr.bf16.mxu0 %v227
    %389 = vmatmul.mubr.bf16.gmra.mrb[0].mxu0 %v226
    %v390 = vpop.f32.mrb[0].mxu0
    %v391 = vadd.f32 0.0, %v390
    %v392 = vpop.f32.mrb[0].mxu0
    %v393 = vpop.f32.mrb[0].mxu0
    %v394 = vadd.f32 0.0, %v393
    %v395 = vpop.f32.mrb[0].mxu0
    %396 = vdwg.mxu0
    %p397 = scmp.eq.s32.totalorder 0, 0
    // Predicated region
    $region34: #{tpu_custom_call.1} parent=1 // pred_check
      %p398 = pneg %p397
    $region35: #{tpu_custom_call.1} parent=1 // pred_check_branch
      %400 = sbr.rel (%p398) target = $region37
    $region36: #{tpu_custom_call.1} parent=1 // pred_region
      %401 = vst [vmem:[#allocation8] sm:$0xff] %v391
      %402 = vst [vmem:[#allocation8 + $0x8] sm:$0xff] %v394
    $region37: #{tpu_custom_call.1} parent=1 // pred_fallthru
      _
    %p403 = scmp.gt.s32.totalorder 0, 0
    // Predicated region
    $region38: #{tpu_custom_call.1} parent=1 // pred_check
      %p404 = pneg %p403
    $region39: #{tpu_custom_call.1} parent=1 // pred_check_branch
      %406 = sbr.rel (%p404) target = $region41
    $region40: #{tpu_custom_call.1} parent=1 // pred_region
      %v407 = vld [vmem:[#allocation8] sm:$0xff]
      %v408 = vld [vmem:[#allocation8 + $0x8] sm:$0xff]
      %v409 = vadd.f32 %v407, %v391
      %v410 = vadd.f32 %v408, %v394
      %411 = vst [vmem:[#allocation8] sm:$0xff] %v409
      %412 = vst [vmem:[#allocation8 + $0x8] sm:$0xff] %v410
    $region41: #{tpu_custom_call.1} parent=1 // pred_fallthru
      _
    // Predicated region
    $region42: #{tpu_custom_call.1} parent=1 // pred_check
      %p413 = pneg %p397
    $region43: #{tpu_custom_call.1} parent=1 // pred_check_branch
      %415 = sbr.rel (%p413) target = $region45
    $region44: #{tpu_custom_call.1} parent=1 // pred_region
      %v416 = vld [vmem:[#allocation8] sm:$0xff]
      %v417 = vld [vmem:[#allocation8 + $0x8] sm:$0xff]
      %v418 = vld [vmem:[%s4] sm:$0x1]
      %v420 = vlaneseq
      %v421 = vshrl.u32 %v420, 7
      %v422 = vsub.s32 0, %v421
      %v423 = vrot.slane %v418, %v422
      %v425 = vadd.f32 %v416, %v423
      %v426 = vadd.f32 %v417, %v423
      %427 = vst [vmem:[#allocation8] sm:$0xff] %v425
      %428 = vst [vmem:[#allocation8 + $0x8] sm:$0xff] %v426
    $region45: #{tpu_custom_call.1} parent=1 // pred_fallthru
      _
    // Predicated region
    $region46: #{tpu_custom_call.1} parent=1 // pred_check
      _
    $region47: #{tpu_custom_call.1} parent=1 // pred_check_branch
      %430 = sbr.rel (0) target = $region49
    $region48: #{tpu_custom_call.1} parent=1 // pred_region
      %s432 = ssub.s32 256, 256
      %433 = vsyncadd [#allocation4], %s432
      %s434 = sshll.u32 [#allocation8], 4
      %s435 = int_to_ptr.vmem [resolvable:$true] %s434
      %440 = dma.vmem_to_hbm [thread:$0]  %s435, 256, %s5, [#allocation4], 128, 128, 8
    $region49: #{tpu_custom_call.1} parent=1 // pred_fallthru
      _
    // Predicated region
    $region50: #{tpu_custom_call.1} parent=1 // pred_check
      _
    $region51: #{tpu_custom_call.1} parent=1 // pred_check_branch
      %442 = sbr.rel (0) target = $region53
    $region52: #{tpu_custom_call.1} parent=1 // pred_region
      %443 = dma.done [#allocation4], 256
    $region53: #{tpu_custom_call.1} parent=1 // pred_fallthru
      _
    %444 = vsyncpa [#allocation3], 1
    %445 = vsyncpa [#allocation6], 1
    %446 = vsyncpa [#allocation4], 1

</llo_original>
